<compile_context>
chip_gen: v6e
topology: v6e:2x2x1
jax: 0.10.0
libtpu: 0.0.40
codegen_flags: <defaults>
</compile_context>

<pallas_src>
import jax
import jax.numpy as jnp
from jax.experimental import pallas as pl
from jax.experimental.pallas import tpu as pltpu


# ----------------------------------------------------------------------------
# Fused kernel: inner model (both CFG branches) + CFG combine, one sample/step.
# ----------------------------------------------------------------------------
def cfg_fused_kernel(sigma_ref, scale_ref, wx_ref, bias_u_ref, bias_c_ref,
                     x_ref, out_ref):
    b = pl.program_id(0)

    sigma = sigma_ref[b]                       # scalar (SMEM)
    scale = scale_ref[0]                       # scalar (SMEM)
    c_in = 1.0 / jnp.sqrt(sigma * sigma + 1.0)

    xs = x_ref[0] * c_in                       # (C, HW) float32, VPU

    n_ch = xs.shape[0]                         # C (static, tiny)
    for co in range(n_ch):                     # static unroll over out-channels
        # channel mixing (1x1-conv equivalent) as VPU broadcast FMAs
        h = xs[0] * wx_ref[0, co]
        for ci in range(1, n_ch):
            h = h + xs[ci] * wx_ref[ci, co]

        # both CFG branches share h; only the conditioning bias differs
        eps_u = jnp.tanh(h + bias_u_ref[b, co])    # EUP
        eps_c = jnp.tanh(h + bias_c_ref[b, co])

        # CFG combine, written straight to the final output (lane-dense row)
        out_ref[0, co, :] = eps_u + (eps_c - eps_u) * scale


# ----------------------------------------------------------------------------
# Wrapper: free NCHW->(B,C,HW) reshape, hoisted conditioning projection,
# single pallas_call.
# ----------------------------------------------------------------------------
@jax.jit
def cfg_denoiser_forward(x_nchw, sigma, uncond, cond, cond_scale, w_x, w_c):
    B, C, H, W = x_nchw.shape
    HW = H * W

    # (B, C, H, W) -> (B, C, HW): contiguous reshape, no transpose / no copy.
    x_chw = x_nchw.reshape(B, C, HW)

    # Hoisted conditioning projection (cond_in @ W_c), computed once for the
    # uncond and cond halves of the "doubled batch".
    bias_u = jnp.dot(uncond, w_c).astype(jnp.float32)      # (B, C)
    bias_c = jnp.dot(cond, w_c).astype(jnp.float32)        # (B, C)

    scale_arr = jnp.reshape(cond_scale, (1,)).astype(jnp.float32)

    smem = pl.BlockSpec(memory_space=pltpu.MemorySpace.SMEM)

    out = pl.pallas_call(
        cfg_fused_kernel,
        out_shape=jax.ShapeDtypeStruct((B, C, HW), jnp.float32),
        grid=(B,),
        in_specs=[
            smem,                                            # sigma      (B,)
            smem,                                            # cond_scale (1,)
            smem,                                            # W_x        (C, C)
            smem,                                            # bias_u     (B, C)
            smem,                                            # bias_c     (B, C)
            pl.BlockSpec((1, C, HW), lambda b: (b, 0, 0)),   # x          (B, C, HW)
        ],
        out_specs=pl.BlockSpec((1, C, HW), lambda b: (b, 0, 0)),
        compiler_params=pltpu.CompilerParams(
            dimension_semantics=("parallel",)),
    )(sigma, scale_arr, w_x, bias_u, bias_c, x_chw)

    # (B, C, HW) -> (B, C, H, W): free reshape.
    return out.reshape(B, C, H, W)


# ----------------------------------------------------------------------------
# Pure-JAX reference (mirrors the PyTorch module exactly, no Pallas).
# ----------------------------------------------------------------------------
def cfg_denoiser_reference(x_nchw, sigma, uncond, cond, cond_scale, w_x, w_c):
    B, C, H, W = x_nchw.shape
    x_seq = jnp.transpose(x_nchw, (0, 2, 3, 1)).reshape(B, H * W, C)

    def inner(xs, sg, ce):
        c_in = 1.0 / jnp.sqrt(sg * sg + 1.0)
        h = jnp.einsum("bsc,cd->bsd", xs * c_in[:, None, None], w_x)
        bias = jnp.einsum("bk,kc->bc", ce, w_c)[:, None, :]
        return jnp.tanh(h + bias)

    x_in = jnp.concatenate([x_seq, x_seq], axis=0)
    sigma_in = jnp.concatenate([sigma, sigma], axis=0)
    cond_in = jnp.concatenate([uncond, cond], axis=0)
    eps = inner(x_in, sigma_in, cond_in)
    u, c = eps[:B], eps[B:]
    out = u + (c - u) * cond_scale
    return jnp.transpose(out.reshape(B, H, W, C), (0, 3, 1, 2))


if __name__ == "__main__":
    B, C, H, W, D = 2, 4, 16, 16, 32

    key = jax.random.PRNGKey(0)
    kx, ks, ku, kc, kwx, kwc = jax.random.split(key, 6)

    x = jax.random.normal(kx, (B, C, H, W), dtype=jnp.float32)
    sigma = jax.random.uniform(ks, (B,), dtype=jnp.float32, minval=0.5, maxval=5.0)
    uncond = jax.random.normal(ku, (B, D), dtype=jnp.float32)
    cond = jax.random.normal(kc, (B, D), dtype=jnp.float32)
    cond_scale = jnp.asarray(7.5, dtype=jnp.float32)

    # deterministic synthetic inner-model parameters
    w_x = 0.1 * jax.random.normal(kwx, (C, C), dtype=jnp.float32)
    w_c = 0.1 * jax.random.normal(kwc, (D, C), dtype=jnp.float32)

    out = cfg_denoiser_forward(x, sigma, uncond, cond, cond_scale, w_x, w_c)
    out = jax.block_until_ready(out)

    ref = cfg_denoiser_reference(x, sigma, uncond, cond, cond_scale, w_x, w_c)
    assert out.shape == x.shape and out.dtype == jnp.float32
    assert jnp.allclose(out, ref, atol=1e-5, rtol=1e-5)

    print("KERNEL_OK")
</pallas_src>

<mosaic_0001>
module attributes {stable_mosaic.version = 11 : i64} {
  func.func @cfg_fused_kernel(%arg0: i32, %arg1: memref<2xf32, #tpu.memory_space<smem>>, %arg2: memref<1xf32, #tpu.memory_space<smem>>, %arg3: memref<4x4xf32, #tpu.memory_space<smem>>, %arg4: memref<2x4xf32, #tpu.memory_space<smem>>, %arg5: memref<2x4xf32, #tpu.memory_space<smem>>, %arg6: memref<1x4x256xf32, #tpu.memory_space<vmem>>, %arg7: memref<1x4x256xf32, #tpu.memory_space<vmem>>) attributes {dimension_semantics = [#tpu.dimension_semantics<parallel>], iteration_bounds = array<i64: 2>, scalar_prefetch = 0 : i64, scratch_operands = 0 : i64, tpu.core_type = #tpu.core_type<tc>, window_params = [{transform_indices = @transform_0, window_bounds = array<i64: 2>}, {transform_indices = @transform_1, window_bounds = array<i64: 1>}, {transform_indices = @transform_2, window_bounds = array<i64: 4, 4>}, {transform_indices = @transform_3, window_bounds = array<i64: 2, 4>}, {transform_indices = @transform_4, window_bounds = array<i64: 2, 4>}, {transform_indices = @transform_5, window_bounds = array<i64: 1, 4, 256>}, {transform_indices = @transform_6, window_bounds = array<i64: 1, 4, 256>}]} {
    %0 = arith.index_cast %arg0 : i32 to index
    %1 = memref.load %arg1[%0] : memref<2xf32, #tpu.memory_space<smem>>
    %c0 = arith.constant 0 : index
    %2 = memref.load %arg2[%c0] : memref<1xf32, #tpu.memory_space<smem>>
    %3 = arith.mulf %1, %1 : f32
    %cst = arith.constant 1.000000e+00 : f32
    %4 = arith.addf %3, %cst : f32
    %5 = math.sqrt %4 : f32
    %cst_0 = arith.constant 1.000000e+00 : f32
    %6 = arith.divf %cst_0, %5 : f32
    %c0_1 = arith.constant 0 : index
    %c0_2 = arith.constant 0 : index
    %c0_3 = arith.constant 0 : index
    %7 = vector.load %arg6[%c0_1, %c0_2, %c0_3] : memref<1x4x256xf32, #tpu.memory_space<vmem>>, vector<1x4x256xf32>
    %8 = vector.shape_cast %7 : vector<1x4x256xf32> to vector<4x256xf32>
    %9 = vector.broadcast %6 : f32 to vector<4x256xf32>
    %10 = arith.mulf %8, %9 : vector<4x256xf32>
    %11 = vector.extract_strided_slice %10 {offsets = [0, 0], sizes = [1, 256], strides = [1, 1]} : vector<4x256xf32> to vector<1x256xf32>
    %12 = vector.shape_cast %11 : vector<1x256xf32> to vector<256xf32>
    %c0_4 = arith.constant 0 : index
    %c0_5 = arith.constant 0 : index
    %13 = memref.load %arg3[%c0_4, %c0_5] : memref<4x4xf32, #tpu.memory_space<smem>>
    %14 = vector.broadcast %13 : f32 to vector<256xf32>
    %15 = arith.mulf %12, %14 : vector<256xf32>
    %16 = vector.extract_strided_slice %10 {offsets = [1, 0], sizes = [1, 256], strides = [1, 1]} : vector<4x256xf32> to vector<1x256xf32>
    %17 = vector.shape_cast %16 : vector<1x256xf32> to vector<256xf32>
    %c1 = arith.constant 1 : index
    %c0_6 = arith.constant 0 : index
    %18 = memref.load %arg3[%c1, %c0_6] : memref<4x4xf32, #tpu.memory_space<smem>>
    %19 = vector.broadcast %18 : f32 to vector<256xf32>
    %20 = arith.mulf %17, %19 : vector<256xf32>
    %21 = arith.addf %15, %20 : vector<256xf32>
    %22 = vector.extract_strided_slice %10 {offsets = [2, 0], sizes = [1, 256], strides = [1, 1]} : vector<4x256xf32> to vector<1x256xf32>
    %23 = vector.shape_cast %22 : vector<1x256xf32> to vector<256xf32>
    %c2 = arith.constant 2 : index
    %c0_7 = arith.constant 0 : index
    %24 = memref.load %arg3[%c2, %c0_7] : memref<4x4xf32, #tpu.memory_space<smem>>
    %25 = vector.broadcast %24 : f32 to vector<256xf32>
    %26 = arith.mulf %23, %25 : vector<256xf32>
    %27 = arith.addf %21, %26 : vector<256xf32>
    %28 = vector.extract_strided_slice %10 {offsets = [3, 0], sizes = [1, 256], strides = [1, 1]} : vector<4x256xf32> to vector<1x256xf32>
    %29 = vector.shape_cast %28 : vector<1x256xf32> to vector<256xf32>
    %c3 = arith.constant 3 : index
    %c0_8 = arith.constant 0 : index
    %30 = memref.load %arg3[%c3, %c0_8] : memref<4x4xf32, #tpu.memory_space<smem>>
    %31 = vector.broadcast %30 : f32 to vector<256xf32>
    %32 = arith.mulf %29, %31 : vector<256xf32>
    %33 = arith.addf %27, %32 : vector<256xf32>
    %34 = arith.index_cast %arg0 : i32 to index
    %c0_9 = arith.constant 0 : index
    %35 = memref.load %arg4[%34, %c0_9] : memref<2x4xf32, #tpu.memory_space<smem>>
    %36 = vector.broadcast %35 : f32 to vector<256xf32>
    %37 = arith.addf %33, %36 : vector<256xf32>
    %38 = math.tanh %37 : vector<256xf32>
    %39 = arith.index_cast %arg0 : i32 to index
    %c0_10 = arith.constant 0 : index
    %40 = memref.load %arg5[%39, %c0_10] : memref<2x4xf32, #tpu.memory_space<smem>>
    %41 = vector.broadcast %40 : f32 to vector<256xf32>
    %42 = arith.addf %33, %41 : vector<256xf32>
    %43 = math.tanh %42 : vector<256xf32>
    %44 = arith.subf %43, %38 : vector<256xf32>
    %45 = vector.broadcast %2 : f32 to vector<256xf32>
    %46 = arith.mulf %44, %45 : vector<256xf32>
    %47 = arith.addf %38, %46 : vector<256xf32>
    %c0_11 = arith.constant 0 : index
    %c0_12 = arith.constant 0 : index
    %c0_13 = arith.constant 0 : index
    %48 = vector.load %arg7[%c0_11, %c0_12, %c0_13] : memref<1x4x256xf32, #tpu.memory_space<vmem>>, vector<1x1x256xf32>
    %49 = vector.shape_cast %48 : vector<1x1x256xf32> to vector<256xf32>
    %50 = vector.shape_cast %47 : vector<256xf32> to vector<1x1x256xf32>
    tpu.vector_store %arg7[%c0_11, %c0_12, %c0_13], %50 {strides = array<i32>} : memref<1x4x256xf32, #tpu.memory_space<vmem>>, vector<1x1x256xf32>,
    %51 = vector.extract_strided_slice %10 {offsets = [0, 0], sizes = [1, 256], strides = [1, 1]} : vector<4x256xf32> to vector<1x256xf32>
    %52 = vector.shape_cast %51 : vector<1x256xf32> to vector<256xf32>
    %c0_14 = arith.constant 0 : index
    %c1_15 = arith.constant 1 : index
    %53 = memref.load %arg3[%c0_14, %c1_15] : memref<4x4xf32, #tpu.memory_space<smem>>
    %54 = vector.broadcast %53 : f32 to vector<256xf32>
    %55 = arith.mulf %52, %54 : vector<256xf32>
    %56 = vector.extract_strided_slice %10 {offsets = [1, 0], sizes = [1, 256], strides = [1, 1]} : vector<4x256xf32> to vector<1x256xf32>
    %57 = vector.shape_cast %56 : vector<1x256xf32> to vector<256xf32>
    %c1_16 = arith.constant 1 : index
    %c1_17 = arith.constant 1 : index
    %58 = memref.load %arg3[%c1_16, %c1_17] : memref<4x4xf32, #tpu.memory_space<smem>>
    %59 = vector.broadcast %58 : f32 to vector<256xf32>
    %60 = arith.mulf %57, %59 : vector<256xf32>
    %61 = arith.addf %55, %60 : vector<256xf32>
    %62 = vector.extract_strided_slice %10 {offsets = [2, 0], sizes = [1, 256], strides = [1, 1]} : vector<4x256xf32> to vector<1x256xf32>
    %63 = vector.shape_cast %62 : vector<1x256xf32> to vector<256xf32>
    %c2_18 = arith.constant 2 : index
    %c1_19 = arith.constant 1 : index
    %64 = memref.load %arg3[%c2_18, %c1_19] : memref<4x4xf32, #tpu.memory_space<smem>>
    %65 = vector.broadcast %64 : f32 to vector<256xf32>
    %66 = arith.mulf %63, %65 : vector<256xf32>
    %67 = arith.addf %61, %66 : vector<256xf32>
    %68 = vector.extract_strided_slice %10 {offsets = [3, 0], sizes = [1, 256], strides = [1, 1]} : vector<4x256xf32> to vector<1x256xf32>
    %69 = vector.shape_cast %68 : vector<1x256xf32> to vector<256xf32>
    %c3_20 = arith.constant 3 : index
    %c1_21 = arith.constant 1 : index
    %70 = memref.load %arg3[%c3_20, %c1_21] : memref<4x4xf32, #tpu.memory_space<smem>>
    %71 = vector.broadcast %70 : f32 to vector<256xf32>
    %72 = arith.mulf %69, %71 : vector<256xf32>
    %73 = arith.addf %67, %72 : vector<256xf32>
    %74 = arith.index_cast %arg0 : i32 to index
    %c1_22 = arith.constant 1 : index
    %75 = memref.load %arg4[%74, %c1_22] : memref<2x4xf32, #tpu.memory_space<smem>>
    %76 = vector.broadcast %75 : f32 to vector<256xf32>
    %77 = arith.addf %73, %76 : vector<256xf32>
    %78 = math.tanh %77 : vector<256xf32>
    %79 = arith.index_cast %arg0 : i32 to index
    %c1_23 = arith.constant 1 : index
    %80 = memref.load %arg5[%79, %c1_23] : memref<2x4xf32, #tpu.memory_space<smem>>
    %81 = vector.broadcast %80 : f32 to vector<256xf32>
    %82 = arith.addf %73, %81 : vector<256xf32>
    %83 = math.tanh %82 : vector<256xf32>
    %84 = arith.subf %83, %78 : vector<256xf32>
    %85 = vector.broadcast %2 : f32 to vector<256xf32>
    %86 = arith.mulf %84, %85 : vector<256xf32>
    %87 = arith.addf %78, %86 : vector<256xf32>
    %c0_24 = arith.constant 0 : index
    %c1_25 = arith.constant 1 : index
    %c0_26 = arith.constant 0 : index
    %88 = vector.load %arg7[%c0_24, %c1_25, %c0_26] : memref<1x4x256xf32, #tpu.memory_space<vmem>>, vector<1x1x256xf32>
    %89 = vector.shape_cast %88 : vector<1x1x256xf32> to vector<256xf32>
    %90 = vector.shape_cast %87 : vector<256xf32> to vector<1x1x256xf32>
    tpu.vector_store %arg7[%c0_24, %c1_25, %c0_26], %90 {strides = array<i32>} : memref<1x4x256xf32, #tpu.memory_space<vmem>>, vector<1x1x256xf32>,
    %91 = vector.extract_strided_slice %10 {offsets = [0, 0], sizes = [1, 256], strides = [1, 1]} : vector<4x256xf32> to vector<1x256xf32>
    %92 = vector.shape_cast %91 : vector<1x256xf32> to vector<256xf32>
    %c0_27 = arith.constant 0 : index
    %c2_28 = arith.constant 2 : index
    %93 = memref.load %arg3[%c0_27, %c2_28] : memref<4x4xf32, #tpu.memory_space<smem>>
    %94 = vector.broadcast %93 : f32 to vector<256xf32>
    %95 = arith.mulf %92, %94 : vector<256xf32>
    %96 = vector.extract_strided_slice %10 {offsets = [1, 0], sizes = [1, 256], strides = [1, 1]} : vector<4x256xf32> to vector<1x256xf32>
    %97 = vector.shape_cast %96 : vector<1x256xf32> to vector<256xf32>
    %c1_29 = arith.constant 1 : index
    %c2_30 = arith.constant 2 : index
    %98 = memref.load %arg3[%c1_29, %c2_30] : memref<4x4xf32, #tpu.memory_space<smem>>
    %99 = vector.broadcast %98 : f32 to vector<256xf32>
    %100 = arith.mulf %97, %99 : vector<256xf32>
    %101 = arith.addf %95, %100 : vector<256xf32>
    %102 = vector.extract_strided_slice %10 {offsets = [2, 0], sizes = [1, 256], strides = [1, 1]} : vector<4x256xf32> to vector<1x256xf32>
    %103 = vector.shape_cast %102 : vector<1x256xf32> to vector<256xf32>
    %c2_31 = arith.constant 2 : index
    %c2_32 = arith.constant 2 : index
    %104 = memref.load %arg3[%c2_31, %c2_32] : memref<4x4xf32, #tpu.memory_space<smem>>
    %105 = vector.broadcast %104 : f32 to vector<256xf32>
    %106 = arith.mulf %103, %105 : vector<256xf32>
    %107 = arith.addf %101, %106 : vector<256xf32>
    %108 = vector.extract_strided_slice %10 {offsets = [3, 0], sizes = [1, 256], strides = [1, 1]} : vector<4x256xf32> to vector<1x256xf32>
    %109 = vector.shape_cast %108 : vector<1x256xf32> to vector<256xf32>
    %c3_33 = arith.constant 3 : index
    %c2_34 = arith.constant 2 : index
    %110 = memref.load %arg3[%c3_33, %c2_34] : memref<4x4xf32, #tpu.memory_space<smem>>
    %111 = vector.broadcast %110 : f32 to vector<256xf32>
    %112 = arith.mulf %109, %111 : vector<256xf32>
    %113 = arith.addf %107, %112 : vector<256xf32>
    %114 = arith.index_cast %arg0 : i32 to index
    %c2_35 = arith.constant 2 : index
    %115 = memref.load %arg4[%114, %c2_35] : memref<2x4xf32, #tpu.memory_space<smem>>
    %116 = vector.broadcast %115 : f32 to vector<256xf32>
    %117 = arith.addf %113, %116 : vector<256xf32>
    %118 = math.tanh %117 : vector<256xf32>
    %119 = arith.index_cast %arg0 : i32 to index
    %c2_36 = arith.constant 2 : index
    %120 = memref.load %arg5[%119, %c2_36] : memref<2x4xf32, #tpu.memory_space<smem>>
    %121 = vector.broadcast %120 : f32 to vector<256xf32>
    %122 = arith.addf %113, %121 : vector<256xf32>
    %123 = math.tanh %122 : vector<256xf32>
    %124 = arith.subf %123, %118 : vector<256xf32>
    %125 = vector.broadcast %2 : f32 to vector<256xf32>
    %126 = arith.mulf %124, %125 : vector<256xf32>
    %127 = arith.addf %118, %126 : vector<256xf32>
    %c0_37 = arith.constant 0 : index
    %c2_38 = arith.constant 2 : index
    %c0_39 = arith.constant 0 : index
    %128 = vector.load %arg7[%c0_37, %c2_38, %c0_39] : memref<1x4x256xf32, #tpu.memory_space<vmem>>, vector<1x1x256xf32>
    %129 = vector.shape_cast %128 : vector<1x1x256xf32> to vector<256xf32>
    %130 = vector.shape_cast %127 : vector<256xf32> to vector<1x1x256xf32>
    tpu.vector_store %arg7[%c0_37, %c2_38, %c0_39], %130 {strides = array<i32>} : memref<1x4x256xf32, #tpu.memory_space<vmem>>, vector<1x1x256xf32>,
    %131 = vector.extract_strided_slice %10 {offsets = [0, 0], sizes = [1, 256], strides = [1, 1]} : vector<4x256xf32> to vector<1x256xf32>
    %132 = vector.shape_cast %131 : vector<1x256xf32> to vector<256xf32>
    %c0_40 = arith.constant 0 : index
    %c3_41 = arith.constant 3 : index
    %133 = memref.load %arg3[%c0_40, %c3_41] : memref<4x4xf32, #tpu.memory_space<smem>>
    %134 = vector.broadcast %133 : f32 to vector<256xf32>
    %135 = arith.mulf %132, %134 : vector<256xf32>
    %136 = vector.extract_strided_slice %10 {offsets = [1, 0], sizes = [1, 256], strides = [1, 1]} : vector<4x256xf32> to vector<1x256xf32>
    %137 = vector.shape_cast %136 : vector<1x256xf32> to vector<256xf32>
    %c1_42 = arith.constant 1 : index
    %c3_43 = arith.constant 3 : index
    %138 = memref.load %arg3[%c1_42, %c3_43] : memref<4x4xf32, #tpu.memory_space<smem>>
    %139 = vector.broadcast %138 : f32 to vector<256xf32>
    %140 = arith.mulf %137, %139 : vector<256xf32>
    %141 = arith.addf %135, %140 : vector<256xf32>
    %142 = vector.extract_strided_slice %10 {offsets = [2, 0], sizes = [1, 256], strides = [1, 1]} : vector<4x256xf32> to vector<1x256xf32>
    %143 = vector.shape_cast %142 : vector<1x256xf32> to vector<256xf32>
    %c2_44 = arith.constant 2 : index
    %c3_45 = arith.constant 3 : index
    %144 = memref.load %arg3[%c2_44, %c3_45] : memref<4x4xf32, #tpu.memory_space<smem>>
    %145 = vector.broadcast %144 : f32 to vector<256xf32>
    %146 = arith.mulf %143, %145 : vector<256xf32>
    %147 = arith.addf %141, %146 : vector<256xf32>
    %148 = vector.extract_strided_slice %10 {offsets = [3, 0], sizes = [1, 256], strides = [1, 1]} : vector<4x256xf32> to vector<1x256xf32>
    %149 = vector.shape_cast %148 : vector<1x256xf32> to vector<256xf32>
    %c3_46 = arith.constant 3 : index
    %c3_47 = arith.constant 3 : index
    %150 = memref.load %arg3[%c3_46, %c3_47] : memref<4x4xf32, #tpu.memory_space<smem>>
    %151 = vector.broadcast %150 : f32 to vector<256xf32>
    %152 = arith.mulf %149, %151 : vector<256xf32>
    %153 = arith.addf %147, %152 : vector<256xf32>
    %154 = arith.index_cast %arg0 : i32 to index
    %c3_48 = arith.constant 3 : index
    %155 = memref.load %arg4[%154, %c3_48] : memref<2x4xf32, #tpu.memory_space<smem>>
    %156 = vector.broadcast %155 : f32 to vector<256xf32>
    %157 = arith.addf %153, %156 : vector<256xf32>
    %158 = math.tanh %157 : vector<256xf32>
    %159 = arith.index_cast %arg0 : i32 to index
    %c3_49 = arith.constant 3 : index
    %160 = memref.load %arg5[%159, %c3_49] : memref<2x4xf32, #tpu.memory_space<smem>>
    %161 = vector.broadcast %160 : f32 to vector<256xf32>
    %162 = arith.addf %153, %161 : vector<256xf32>
    %163 = math.tanh %162 : vector<256xf32>
    %164 = arith.subf %163, %158 : vector<256xf32>
    %165 = vector.broadcast %2 : f32 to vector<256xf32>
    %166 = arith.mulf %164, %165 : vector<256xf32>
    %167 = arith.addf %158, %166 : vector<256xf32>
    %c0_50 = arith.constant 0 : index
    %c3_51 = arith.constant 3 : index
    %c0_52 = arith.constant 0 : index
    %168 = vector.load %arg7[%c0_50, %c3_51, %c0_52] : memref<1x4x256xf32, #tpu.memory_space<vmem>>, vector<1x1x256xf32>
    %169 = vector.shape_cast %168 : vector<1x1x256xf32> to vector<256xf32>
    %170 = vector.shape_cast %167 : vector<256xf32> to vector<1x1x256xf32>
    tpu.vector_store %arg7[%c0_50, %c3_51, %c0_52], %170 {strides = array<i32>} : memref<1x4x256xf32, #tpu.memory_space<vmem>>, vector<1x1x256xf32>,
    return
  }
  func.func @transform_0(%arg0: i32) -> i32 {
    %c0_i32 = arith.constant 0 : i32
    %c0_i32_0 = arith.constant 0 : i32
    return %c0_i32 : i32
  }
  func.func @transform_1(%arg0: i32) -> i32 {
    %c0_i32 = arith.constant 0 : i32
    %c0_i32_0 = arith.constant 0 : i32
    return %c0_i32 : i32
  }
  func.func @transform_2(%arg0: i32) -> (i32, i32) {
    %c0_i32 = arith.constant 0 : i32
    %c0_i32_0 = arith.constant 0 : i32
    %c0_i32_1 = arith.constant 0 : i32
    return %c0_i32, %c0_i32_0 : i32, i32
  }
  func.func @transform_3(%arg0: i32) -> (i32, i32) {
    %c0_i32 = arith.constant 0 : i32
    %c0_i32_0 = arith.constant 0 : i32
    %c0_i32_1 = arith.constant 0 : i32
    return %c0_i32, %c0_i32_0 : i32, i32
  }
  func.func @transform_4(%arg0: i32) -> (i32, i32) {
    %c0_i32 = arith.constant 0 : i32
    %c0_i32_0 = arith.constant 0 : i32
    %c0_i32_1 = arith.constant 0 : i32
    return %c0_i32, %c0_i32_0 : i32, i32
  }
  func.func @transform_5(%arg0: i32) -> (i32, i32, i32) {
    %c0_i32 = arith.constant 0 : i32
    %c0_i32_0 = arith.constant 0 : i32
    %c0_i32_1 = arith.constant 0 : i32
    return %arg0, %c0_i32, %c0_i32_0 : i32, i32, i32
  }
  func.func @transform_6(%arg0: i32) -> (i32, i32, i32) {
    %c0_i32 = arith.constant 0 : i32
    %c0_i32_0 = arith.constant 0 : i32
    %c0_i32_1 = arith.constant 0 : i32
    return %arg0, %c0_i32, %c0_i32_0 : i32, i32, i32
  }
}

</mosaic_0001>

<llo_original>
// kernel: cfg_denoiser_forward.1
$region0: #{cfg_denoiser_forward.1}
  #allocation0 [shape = 'u32[]', space=smem, size = 0x4, offset = 0x4, fixed_abs, tag = 'smem constant byte address 0x4 - core index']
  #allocation1 [shape = 'u32[144,128]{1,0:T(1,128)}', space=vmem, size = 0x12000, scoped, tag = 'internal scratch']
  #allocation2 [shape = 'f32[1]{0:T(128)S(6)}', space=smem, size = 0x200, scoped, tag = 'scoped memory for cfg_denoiser_forward.1']
  %s0 = inlined_call_operand.vmem [shape: f32[2], index: 0, kind: input, shape index: {}]
  %s1 = inlined_call_operand.<no memory space> [shape: f32[1], index: 1, kind: input, shape index: {}]
  %s2 = inlined_call_operand.vmem [shape: f32[4,4], index: 2, kind: input, shape index: {}]
  %s3 = inlined_call_operand.vmem [shape: f32[2,4], index: 3, kind: input, shape index: {}]
  %s4 = inlined_call_operand.vmem [shape: f32[2,4], index: 4, kind: input, shape index: {}]
  %s5 = inlined_call_operand.vmem [shape: f32[2,4,256], index: 5, kind: input, shape index: {}]
  %s6 = inlined_call_operand.vmem [shape: f32[2,4,256], index: 6, kind: output, shape index: {}]
  %s7 = sld [smem:[#allocation0]]
  $region73: #{cfg_denoiser_forward.1} parent=0
    _
  %s9 = ssub.s32 1, %s7
  %s10 = scalar_select 0, %s9, %s7
  %11 = sst [smem:[#allocation2]] %s1
  $region1: #{cfg_denoiser_forward.1} parent=0
    #allocation3 [shape = 'u8[512]{0}', space=smem, size = 0x200, scoped, tag = 'input window, operand 0, single buffered']
    #allocation4 [shape = 's32[2]{0}', space=sflag, size = 0x8, scoped, tag = 'scoped memory for cfg_denoiser_forward.1']
    #allocation5 [shape = 'u8[2048]{0}', space=smem, size = 0x800, scoped, tag = 'input window, operand 2, single buffered']
    #allocation6 [shape = 's32[1]{0}', space=sflag, size = 0x4, scoped, tag = 'scoped memory for cfg_denoiser_forward.1']
    #allocation7 [shape = 'u8[1024]{0}', space=smem, size = 0x400, scoped, tag = 'input window, operand 3, single buffered']
    #allocation8 [shape = 'u8[1024]{0}', space=smem, size = 0x400, scoped, tag = 'input window, operand 4, single buffered']
    #allocation9 [shape = 's32[1]{0}', space=sflag, size = 0x4, scoped, tag = 'scoped memory for cfg_denoiser_forward.1']
    %12 = vsyncpa [#allocation4], 0
    %13 = vsyncpa [#allocation6], 0
    %14 = vsyncpa [#allocation9], 0
    loop: start=0, step=1, limit=4
    $region2: #{cfg_denoiser_forward.1} parent=1 // loop_pre_header
      _
    $region3: #{cfg_denoiser_forward.1} parent=1 // loop_header
      %s16 = sphi 0, %s20
      %p17 = scmp.ge.s32.totalorder %s16, 4
      %s24 = sphi 0, %s24
      %s26 = sphi 0, %s24
      %s27 = sphi 0, %s26
      %s41 = sphi 0, %s27
      %s45 = sphi 0, %s45
      %s47 = sphi 0, %s45
      %s48 = sphi 0, %s47
      %s62 = sphi 0, %s48
      %s66 = sphi 0, %s66
      %s68 = sphi 0, %s66
      %s69 = sphi 0, %s68
      %s83 = sphi 0, %s69
      %s87 = sphi 0, %s87
      %s89 = sphi 0, %s87
      %s90 = sphi 0, %s89
      %s104 = sphi 0, %s90
      %s108 = sphi 0, %s108
      %s110 = sphi 0, %s108
      %s111 = sphi 0, %s110
      %s125 = sphi 0, %s111
      %s131 = sphi 0, %s133
      %s134 = sphi 0, %s131
      %s135 = sphi 0, %s134
      %s151 = sphi 0, %s135
      %s157 = sphi 0, %s159
      %s160 = sphi 0, %s157
      %s161 = sphi 0, %s160
      %s177 = sphi 0, %s161
    $region4: #{cfg_denoiser_forward.1} parent=1 // loop_header_branch
      %19 = sbr.rel (%p17) target = $region8
    $region5: #{cfg_denoiser_forward.1} parent=1 // loop_body
      %s21 = ssub.s32 %s16, 1
      %s22 = ssub.s32 %s16, 2
      %s23 = sadd.s32 %s16, 1
      %s25 = sadd.s32 %s24, 1
      %p28 = scmp.eq.s32.totalorder %s16, 1
      %p29 = scmp.ne.s32.totalorder %s24, %s26
      %p30 = scmp.eq.s32.totalorder %s16, 0
      %p31 = por %p29, %p30
      %p32 = scmp.ne.s32.totalorder %s24, %s26
      %p33 = scmp.eq.s32.totalorder %s21, 1
      %p34 = por %p32, %p33
      %p35 = scmp.ne.s32.totalorder %s26, %s27
      %p36 = scmp.eq.s32.totalorder %s21, 0
      %p37 = por %p35, %p36
      %p38 = scmp.ne.s32.totalorder %s26, %s27
      %p39 = scmp.eq.s32.totalorder %s22, 1
      %p40 = por %p38, %p39
      %p42 = scmp.ne.s32.totalorder %s27, %s41
      %p43 = scmp.eq.s32.totalorder %s22, 0
      %p44 = por %p42, %p43
      %s46 = sadd.s32 %s45, 1
      %p49 = scmp.eq.s32.totalorder %s16, 1
      %p50 = scmp.ne.s32.totalorder %s45, %s47
      %p51 = scmp.eq.s32.totalorder %s16, 0
      %p52 = por %p50, %p51
      %p53 = scmp.ne.s32.totalorder %s45, %s47
      %p54 = scmp.eq.s32.totalorder %s21, 1
      %p55 = por %p53, %p54
      %p56 = scmp.ne.s32.totalorder %s47, %s48
      %p57 = scmp.eq.s32.totalorder %s21, 0
      %p58 = por %p56, %p57
      %p59 = scmp.ne.s32.totalorder %s47, %s48
      %p60 = scmp.eq.s32.totalorder %s22, 1
      %p61 = por %p59, %p60
      %p63 = scmp.ne.s32.totalorder %s48, %s62
      %p64 = scmp.eq.s32.totalorder %s22, 0
      %p65 = por %p63, %p64
      %s67 = sadd.s32 %s66, 1
      %p70 = scmp.eq.s32.totalorder %s16, 1
      %p71 = scmp.ne.s32.totalorder %s66, %s68
      %p72 = scmp.eq.s32.totalorder %s16, 0
      %p73 = por %p71, %p72
      %p74 = scmp.ne.s32.totalorder %s66, %s68
      %p75 = scmp.eq.s32.totalorder %s21, 1
      %p76 = por %p74, %p75
      %p77 = scmp.ne.s32.totalorder %s68, %s69
      %p78 = scmp.eq.s32.totalorder %s21, 0
      %p79 = por %p77, %p78
      %p80 = scmp.ne.s32.totalorder %s68, %s69
      %p81 = scmp.eq.s32.totalorder %s22, 1
      %p82 = por %p80, %p81
      %p84 = scmp.ne.s32.totalorder %s69, %s83
      %p85 = scmp.eq.s32.totalorder %s22, 0
      %p86 = por %p84, %p85
      %s88 = sadd.s32 %s87, 1
      %p91 = scmp.eq.s32.totalorder %s16, 1
      %p92 = scmp.ne.s32.totalorder %s87, %s89
      %p93 = scmp.eq.s32.totalorder %s16, 0
      %p94 = por %p92, %p93
      %p95 = scmp.ne.s32.totalorder %s87, %s89
      %p96 = scmp.eq.s32.totalorder %s21, 1
      %p97 = por %p95, %p96
      %p98 = scmp.ne.s32.totalorder %s89, %s90
      %p99 = scmp.eq.s32.totalorder %s21, 0
      %p100 = por %p98, %p99
      %p101 = scmp.ne.s32.totalorder %s89, %s90
      %p102 = scmp.eq.s32.totalorder %s22, 1
      %p103 = por %p101, %p102
      %p105 = scmp.ne.s32.totalorder %s90, %s104
      %p106 = scmp.eq.s32.totalorder %s22, 0
      %p107 = por %p105, %p106
      %s109 = sadd.s32 %s108, 1
      %p112 = scmp.eq.s32.totalorder %s16, 1
      %p113 = scmp.ne.s32.totalorder %s108, %s110
      %p114 = scmp.eq.s32.totalorder %s16, 0
      %p115 = por %p113, %p114
      %p116 = scmp.ne.s32.totalorder %s108, %s110
      %p117 = scmp.eq.s32.totalorder %s21, 1
      %p118 = por %p116, %p117
      %p119 = scmp.ne.s32.totalorder %s110, %s111
      %p120 = scmp.eq.s32.totalorder %s21, 0
      %p121 = por %p119, %p120
      %p122 = scmp.ne.s32.totalorder %s110, %s111
      %p123 = scmp.eq.s32.totalorder %s22, 1
      %p124 = por %p122, %p123
      %p126 = scmp.ne.s32.totalorder %s111, %s125
      %p127 = scmp.eq.s32.totalorder %s22, 0
      %p128 = por %p126, %p127
      %s129 = ssub.s32 %s16, %s23
      %p130 = scmp.eq.s32.totalorder %s129, 0
      %s132 = sadd.s32 %s131, 1
      %s133 = scalar_select %p130, %s131, %s132
      %p136 = pneg %p130
      %p137 = scmp.eq.s32.totalorder %s16, 1
      %p138 = por %p136, %p137
      %p139 = scmp.ne.s32.totalorder %s131, %s134
      %p140 = scmp.eq.s32.totalorder %s16, 0
      %p141 = por %p139, %p140
      %p142 = scmp.ne.s32.totalorder %s131, %s134
      %p143 = scmp.eq.s32.totalorder %s21, 1
      %p144 = por %p142, %p143
      %p145 = scmp.ne.s32.totalorder %s134, %s135
      %p146 = scmp.eq.s32.totalorder %s21, 0
      %p147 = por %p145, %p146
      %p148 = scmp.ne.s32.totalorder %s134, %s135
      %p149 = scmp.eq.s32.totalorder %s22, 1
      %p150 = por %p148, %p149
      %p152 = scmp.ne.s32.totalorder %s135, %s151
      %p153 = scmp.eq.s32.totalorder %s22, 0
      %p154 = por %p152, %p153
      %s155 = ssub.s32 %s16, %s23
      %p156 = scmp.eq.s32.totalorder %s155, 0
      %s158 = sadd.s32 %s157, 1
      %s159 = scalar_select %p156, %s157, %s158
      %p162 = pneg %p156
      %p163 = scmp.eq.s32.totalorder %s16, 1
      %p164 = por %p162, %p163
      %p165 = scmp.ne.s32.totalorder %s157, %s160
      %p166 = scmp.eq.s32.totalorder %s16, 0
      %p167 = por %p165, %p166
      %p168 = scmp.ne.s32.totalorder %s157, %s160
      %p169 = scmp.eq.s32.totalorder %s21, 1
      %p170 = por %p168, %p169
      %p171 = scmp.ne.s32.totalorder %s160, %s161
      %p172 = scmp.eq.s32.totalorder %s21, 0
      %p173 = por %p171, %p172
      %p174 = scmp.ne.s32.totalorder %s160, %s161
      %p175 = scmp.eq.s32.totalorder %s22, 1
      %p176 = por %p174, %p175
      %p178 = scmp.ne.s32.totalorder %s161, %s177
      %p179 = scmp.eq.s32.totalorder %s22, 0
      %p180 = por %p178, %p179
      %p181 = scmp.le.s32.totalorder 1, %s16
      %p182 = scmp.lt.s32.totalorder %s16, 3
      %p183 = pnand %p181, %p182
      %p184 = pneg %p183
      // Predicated region
      $region9: #{cfg_denoiser_forward.1} parent=5 // pred_check
        _
      $region10: #{cfg_denoiser_forward.1} parent=5 // pred_check_branch
        %186 = sbr.rel (%p183) target = $region12
      $region11: #{cfg_denoiser_forward.1} parent=5 // pred_region
        %s187 = ssub.s32 %s16, 1
        // Predicated region
        $region13: #{cfg_denoiser_forward.1} parent=11 // pred_check
          %p188 = pneg %p37
        $region14: #{cfg_denoiser_forward.1} parent=11 // pred_check_branch
          %190 = sbr.rel (%p188) target = $region16
        $region15: #{cfg_denoiser_forward.1} parent=11 // pred_region
          %s192 = ssub.s32 16, 16
          %193 = vsyncadd [#allocation4], %s192
          %s195 = sshll.u32 %s0, 4
          %s196 = int_to_ptr.vmem [resolvable:$true] %s195
          %198 = dma.vmem_to_smem %s196, 16, [#allocation3], [#allocation4]
        $region16: #{cfg_denoiser_forward.1} parent=11 // pred_fallthru
          _
        // Predicated region
        $region17: #{cfg_denoiser_forward.1} parent=11 // pred_check
          %p199 = pneg %p58
        $region18: #{cfg_denoiser_forward.1} parent=11 // pred_check_branch
          %201 = sbr.rel (%p199) target = $region20
        $region19: #{cfg_denoiser_forward.1} parent=11 // pred_region
          _
        $region20: #{cfg_denoiser_forward.1} parent=11 // pred_fallthru
          _
        // Predicated region
        $region21: #{cfg_denoiser_forward.1} parent=11 // pred_check
          %p202 = pneg %p79
        $region22: #{cfg_denoiser_forward.1} parent=11 // pred_check_branch
          %204 = sbr.rel (%p202) target = $region24
        $region23: #{cfg_denoiser_forward.1} parent=11 // pred_region
          %s206 = ssub.s32 64, 64
          %207 = vsyncadd [#allocation6], %s206
          %s209 = sshll.u32 %s2, 4
          %s210 = int_to_ptr.vmem [resolvable:$true] %s209
          %212 = dma.vmem_to_smem %s210, 64, [#allocation5], [#allocation6]
        $region24: #{cfg_denoiser_forward.1} parent=11 // pred_fallthru
          _
        // Predicated region
        $region25: #{cfg_denoiser_forward.1} parent=11 // pred_check
          %p213 = pneg %p100
        $region26: #{cfg_denoiser_forward.1} parent=11 // pred_check_branch
          %215 = sbr.rel (%p213) target = $region28
        $region27: #{cfg_denoiser_forward.1} parent=11 // pred_region
          %s217 = ssub.s32 32, 32
          %218 = vsyncadd [#allocation6], %s217
          %s220 = sshll.u32 %s3, 4
          %s221 = int_to_ptr.vmem [resolvable:$true] %s220
          %223 = dma.vmem_to_smem %s221, 32, [#allocation7], [#allocation6]
        $region28: #{cfg_denoiser_forward.1} parent=11 // pred_fallthru
          _
        // Predicated region
        $region29: #{cfg_denoiser_forward.1} parent=11 // pred_check
          %p224 = pneg %p121
        $region30: #{cfg_denoiser_forward.1} parent=11 // pred_check_branch
          %226 = sbr.rel (%p224) target = $region32
        $region31: #{cfg_denoiser_forward.1} parent=11 // pred_region
          %s228 = ssub.s32 32, 32
          %229 = vsyncadd [#allocation9], %s228
          %s231 = sshll.u32 %s4, 4
          %s232 = int_to_ptr.vmem [resolvable:$true] %s231
          %234 = dma.vmem_to_smem %s232, 32, [#allocation8], [#allocation9]
        $region32: #{cfg_denoiser_forward.1} parent=11 // pred_fallthru
          _
      $region12: #{cfg_denoiser_forward.1} parent=5 // pred_fallthru
        _
      %p235 = scmp.lt.s32.totalorder %s16, 2
      // Predicated region
      $region33: #{cfg_denoiser_forward.1} parent=5 // pred_check
        %p236 = pneg %p235
      $region34: #{cfg_denoiser_forward.1} parent=5 // pred_check_branch
        %238 = sbr.rel (%p236) target = $region36
      $region35: #{cfg_denoiser_forward.1} parent=5 // pred_region
        // Predicated region
        $region37: #{cfg_denoiser_forward.1} parent=35 // pred_check
          %p239 = pneg %p141
        $region38: #{cfg_denoiser_forward.1} parent=35 // pred_check_branch
          %241 = sbr.rel (%p239) target = $region40
        $region39: #{cfg_denoiser_forward.1} parent=35 // pred_region
          %p242 = scmp.lt.s32.totalorder %s16, 1
          %s243 = scalar_select %p242, %s16, 1
          %s244 = smul.addr %s243, 2
          %s245 = smul.addr %s244, 4
          %s246 = scalar_lea.vmem %s5, %s245
        $region40: #{cfg_denoiser_forward.1} parent=35 // pred_fallthru
          _
      $region36: #{cfg_denoiser_forward.1} parent=5 // pred_fallthru
        _
      %p247 = scmp.le.s32.totalorder 1, %s16
      %p248 = scmp.lt.s32.totalorder %s16, 3
      %p249 = pnand %p247, %p248
      %p250 = pneg %p249
      // Predicated region
      $region41: #{cfg_denoiser_forward.1} parent=5 // pred_check
        _
      $region42: #{cfg_denoiser_forward.1} parent=5 // pred_check_branch
        %252 = sbr.rel (%p249) target = $region44
      $region43: #{cfg_denoiser_forward.1} parent=5 // pred_region
        %s253 = ssub.s32 %s16, 1
        // Predicated region
        $region45: #{cfg_denoiser_forward.1} parent=43 // pred_check
          %p254 = pneg %p37
        $region46: #{cfg_denoiser_forward.1} parent=43 // pred_check_branch
          %256 = sbr.rel (%p254) target = $region48
        $region47: #{cfg_denoiser_forward.1} parent=43 // pred_region
          %257 = dma.done [#allocation4], 16
        $region48: #{cfg_denoiser_forward.1} parent=43 // pred_fallthru
          _
        // Predicated region
        $region49: #{cfg_denoiser_forward.1} parent=43 // pred_check
          %p258 = pneg %p79
        $region50: #{cfg_denoiser_forward.1} parent=43 // pred_check_branch
          %260 = sbr.rel (%p258) target = $region52
        $region51: #{cfg_denoiser_forward.1} parent=43 // pred_region
          %261 = dma.done [#allocation6], 64
        $region52: #{cfg_denoiser_forward.1} parent=43 // pred_fallthru
          _
        // Predicated region
        $region53: #{cfg_denoiser_forward.1} parent=43 // pred_check
          %p262 = pneg %p100
        $region54: #{cfg_denoiser_forward.1} parent=43 // pred_check_branch
          %264 = sbr.rel (%p262) target = $region56
        $region55: #{cfg_denoiser_forward.1} parent=43 // pred_region
          %265 = dma.done [#allocation6], 32
        $region56: #{cfg_denoiser_forward.1} parent=43 // pred_fallthru
          _
        // Predicated region
        $region57: #{cfg_denoiser_forward.1} parent=43 // pred_check
          %p266 = pneg %p121
        $region58: #{cfg_denoiser_forward.1} parent=43 // pred_check_branch
          %268 = sbr.rel (%p266) target = $region60
        $region59: #{cfg_denoiser_forward.1} parent=43 // pred_region
          %269 = dma.done [#allocation9], 32
        $region60: #{cfg_denoiser_forward.1} parent=43 // pred_fallthru
          _
        %270 = sfence
        %p271 = pneg %p37
        %p272 = pneg %p34
        %p273 = pneg %p58
        %p274 = pneg %p55
        %p275 = pneg %p79
        %p276 = pneg %p76
        %p277 = pneg %p100
        %p278 = pneg %p97
        %p279 = pneg %p121
        %p280 = pneg %p118
        %p281 = scmp.lt.s32.totalorder %s21, 1
        %s282 = scalar_select %p281, %s21, 1
        %s283 = smul.addr %s282, 2
        %s284 = smul.addr %s283, 4
        %s285 = scalar_lea.vmem %s5, %s284
        %p286 = pneg %p147
        %p287 = pneg %p144
        %p288 = pneg %p173
        %p289 = pneg %p170
        %p290 = scmp.lt.s32.totalorder %s21, 1
        %s291 = scalar_select %p290, %s21, 1
        %s292 = smul.addr %s291, 2
        %s293 = smul.addr %s292, 4
        %s294 = scalar_lea.vmem %s6, %s293
        %p295 = scmp.lt.s32.totalorder %s21, 1
        %s296 = scalar_select %p295, %s21, 1
        %s297 = smul.addr %s296, 2
        %s298 = smul.addr %s297, 4
        %s299 = scalar_lea.vmem %s5, %s298
        %p300 = scmp.lt.s32.totalorder %s21, 1
        %s301 = scalar_select %p300, %s21, 1
        %s302 = smul.addr %s301, 2
        %s303 = smul.addr %s302, 4
        %s304 = scalar_lea.vmem %s6, %s303
        %s305 = sld [smem:[#allocation3 + %s21]]
        %s306 = sld [smem:[#allocation2]]
        %s307 = smul.f32 %s305, %s305
        %s308 = sadd.f32 %s307, 1.0
        %v309 = vstv %s308
        %v310 = vrsqrt.pop %v309
        %v311 = vmul.f32 %v309, %v310
        %vm312 = vcmp.eq.f32.partialorder %v309, inf
        %v313 = vsel %vm312, %v309, %v311
        %vm314 = vcmp.eq.f32.partialorder %v309, 0.0
        %v315 = vand.u32 %v309, 2147483648
        %v316 = vsel %vm314, %v315, %v313
        %s317 = vtos %v316
        %v318 = vstv %s317
        %v319 = vrcp.pop %v318
        %s320 = vtos %v319
        %v321 = vld [vmem:[%s299] sm:$0xff]
        %v322 = vstv %s320
        %v323 = vmul.f32 %v321, %v322
        %s324 = sld [smem:[#allocation5]]
        %v325 = vstv %s324
        %v326 = vmul.f32 %v323, %v325
        %s327 = sld [smem:[#allocation5 + $0x80]]
        %v328 = vstv %s327
        %v329 = vmul.f32 %v323, %v328
        %v331 = vrot.slane %v329, 5
        %v332 = vrot.slane %v331, 4
        %v334 = vadd.f32 %v326, %v332
        %s335 = sld [smem:[#allocation5 + $0x100]]
        %v336 = vstv %s335
        %v337 = vmul.f32 %v323, %v336
        %v339 = vrot.slane %v337, 6
        %v340 = vrot.slane %v339, 4
        %v342 = vadd.f32 %v334, %v340
        %s343 = sld [smem:[#allocation5 + $0x180]]
        %v344 = vstv %s343
        %v345 = vmul.f32 %v323, %v344
        %v347 = vrot.slane %v345, 7
        %v348 = vrot.slane %v347, 4
        %v350 = vadd.f32 %v342, %v348
        %s351 = smul.u32 %s21, 128
        %s352 = sld [smem:[#allocation7 + %s351]]
        %v353 = vstv %s352
        %v354 = vadd.f32 %v350, %v353
        %v355 = vtanh.pop %v354
        %s356 = sld [smem:[#allocation8 + %s351]]
        %v357 = vstv %s356
        %v358 = vadd.f32 %v350, %v357
        %v359 = vtanh.pop %v358
        %v360 = vsub.f32 %v359, %v355
        %v361 = vstv %s306
        %v362 = vmul.f32 %v360, %v361
        %v363 = vadd.f32 %v355, %v362
        %v366 = vunpack.c.l.s4 1966171168
        %v367 = vunpack.c.0.s8 %v366
        %v368 = vlaneseq
        %v369 = vshrl.u32 %v368, 7
        %v370 = vsub.s32 %v367, %v369
        %v371 = vrot.slane %v363, %v370
        %v373 = vunpack.c.l.s4 1966171168
        %v374 = vunpack.c.0.s8 %v373
        %v375 = vlaneseq
        %v376 = vshrl.u32 %v375, 7
        %v377 = vsub.s32 %v374, %v376
        %v378 = vrot.slane %v371, %v377
        %v380 = vlaneseq
        %vm381 = vcmp.ge.s32.totalorder %v380, 0
        %vm382 = vcmp.lt.s32.totalorder %v380, 256
        %vm383 = vmand %vm381, %vm382
        %384 = vst.msk [vmem:[%s304] ss:$4 sm:$0x3] %vm383, %v378
        %s385 = sld [smem:[#allocation5 + $0x1]]
        %v386 = vstv %s385
        %v387 = vmul.f32 %v323, %v386
        %s388 = sld [smem:[#allocation5 + $0x81]]
        %v389 = vstv %s388
        %v390 = vmul.f32 %v323, %v389
        %v392 = vrot.slane %v390, 5
        %v393 = vrot.slane %v392, 4
        %v395 = vadd.f32 %v387, %v393
        %s396 = sld [smem:[#allocation5 + $0x101]]
        %v397 = vstv %s396
        %v398 = vmul.f32 %v323, %v397
        %v400 = vrot.slane %v398, 6
        %v401 = vrot.slane %v400, 4
        %v403 = vadd.f32 %v395, %v401
        %s404 = sld [smem:[#allocation5 + $0x181]]
        %v405 = vstv %s404
        %v406 = vmul.f32 %v323, %v405
        %v408 = vrot.slane %v406, 7
        %v409 = vrot.slane %v408, 4
        %v411 = vadd.f32 %v403, %v409
        %s412 = sadd.s32 %s351, 1
        %s413 = sld [smem:[#allocation7 + %s412]]
        %v414 = vstv %s413
        %v415 = vadd.f32 %v411, %v414
        %v416 = vtanh.pop %v415
        %s417 = sld [smem:[#allocation8 + %s412]]
        %v418 = vstv %s417
        %v419 = vadd.f32 %v411, %v418
        %v420 = vtanh.pop %v419
        %v421 = vsub.f32 %v420, %v416
        %v422 = vmul.f32 %v421, %v361
        %v423 = vadd.f32 %v416, %v422
        %v426 = vunpack.c.l.s4 1966171168
        %v427 = vunpack.c.0.s8 %v426
        %v428 = vlaneseq
        %v429 = vshrl.u32 %v428, 7
        %v430 = vsub.s32 %v427, %v429
        %v431 = vrot.slane %v423, %v430
        %v433 = vunpack.c.l.s4 1966171168
        %v434 = vunpack.c.0.s8 %v433
        %v435 = vlaneseq
        %v436 = vshrl.u32 %v435, 7
        %v437 = vsub.s32 %v434, %v436
        %v438 = vrot.slane %v431, %v437
        %s440 = scalar_lea.vmem %s304, 1
        %441 = vst.msk [vmem:[%s440] ss:$4 sm:$0x3] %vm383, %v438
        %s442 = sld [smem:[#allocation5 + $0x2]]
        %v443 = vstv %s442
        %v444 = vmul.f32 %v323, %v443
        %s445 = sld [smem:[#allocation5 + $0x82]]
        %v446 = vstv %s445
        %v447 = vmul.f32 %v323, %v446
        %v449 = vrot.slane %v447, 5
        %v450 = vrot.slane %v449, 4
        %v452 = vadd.f32 %v444, %v450
        %s453 = sld [smem:[#allocation5 + $0x102]]
        %v454 = vstv %s453
        %v455 = vmul.f32 %v323, %v454
        %v457 = vrot.slane %v455, 6
        %v458 = vrot.slane %v457, 4
        %v460 = vadd.f32 %v452, %v458
        %s461 = sld [smem:[#allocation5 + $0x182]]
        %v462 = vstv %s461
        %v463 = vmul.f32 %v323, %v462
        %v465 = vrot.slane %v463, 7
        %v466 = vrot.slane %v465, 4
        %v468 = vadd.f32 %v460, %v466
        %s469 = sadd.s32 %s351, 2
        %s470 = sld [smem:[#allocation7 + %s469]]
        %v471 = vstv %s470
        %v472 = vadd.f32 %v468, %v471
        %v473 = vtanh.pop %v472
        %s474 = sld [smem:[#allocation8 + %s469]]
        %v475 = vstv %s474
        %v476 = vadd.f32 %v468, %v475
        %v477 = vtanh.pop %v476
        %v478 = vsub.f32 %v477, %v473
        %v479 = vmul.f32 %v478, %v361
        %v480 = vadd.f32 %v473, %v479
        %v483 = vunpack.c.l.s4 1966171168
        %v484 = vunpack.c.0.s8 %v483
        %v485 = vlaneseq
        %v486 = vshrl.u32 %v485, 7
        %v487 = vsub.s32 %v484, %v486
        %v488 = vrot.slane %v480, %v487
        %v490 = vunpack.c.l.s4 1966171168
        %v491 = vunpack.c.0.s8 %v490
        %v492 = vlaneseq
        %v493 = vshrl.u32 %v492, 7
        %v494 = vsub.s32 %v491, %v493
        %v495 = vrot.slane %v488, %v494
        %s497 = scalar_lea.vmem %s304, 2
        %498 = vst.msk [vmem:[%s497] ss:$4 sm:$0x3] %vm383, %v495
        %s499 = sld [smem:[#allocation5 + $0x3]]
        %v500 = vstv %s499
        %v501 = vmul.f32 %v323, %v500
        %s502 = sld [smem:[#allocation5 + $0x83]]
        %v503 = vstv %s502
        %v504 = vmul.f32 %v323, %v503
        %v506 = vrot.slane %v504, 5
        %v507 = vrot.slane %v506, 4
        %v509 = vadd.f32 %v501, %v507
        %s510 = sld [smem:[#allocation5 + $0x103]]
        %v511 = vstv %s510
        %v512 = vmul.f32 %v323, %v511
        %v514 = vrot.slane %v512, 6
        %v515 = vrot.slane %v514, 4
        %v517 = vadd.f32 %v509, %v515
        %s518 = sld [smem:[#allocation5 + $0x183]]
        %v519 = vstv %s518
        %v520 = vmul.f32 %v323, %v519
        %v522 = vrot.slane %v520, 7
        %v523 = vrot.slane %v522, 4
        %v525 = vadd.f32 %v517, %v523
        %s526 = sadd.s32 %s351, 3
        %s527 = sld [smem:[#allocation7 + %s526]]
        %v528 = vstv %s527
        %v529 = vadd.f32 %v525, %v528
        %v530 = vtanh.pop %v529
        %s531 = sld [smem:[#allocation8 + %s526]]
        %v532 = vstv %s531
        %v533 = vadd.f32 %v525, %v532
        %v534 = vtanh.pop %v533
        %v535 = vsub.f32 %v534, %v530
        %v536 = vmul.f32 %v535, %v361
        %v537 = vadd.f32 %v530, %v536
        %v540 = vunpack.c.l.s4 1966171168
        %v541 = vunpack.c.0.s8 %v540
        %v542 = vlaneseq
        %v543 = vshrl.u32 %v542, 7
        %v544 = vsub.s32 %v541, %v543
        %v545 = vrot.slane %v537, %v544
        %v547 = vunpack.c.l.s4 1966171168
        %v548 = vunpack.c.0.s8 %v547
        %v549 = vlaneseq
        %v550 = vshrl.u32 %v549, 7
        %v551 = vsub.s32 %v548, %v550
        %v552 = vrot.slane %v545, %v551
        %s554 = scalar_lea.vmem %s304, 3
        %555 = vst.msk [vmem:[%s554] ss:$4 sm:$0x3] %vm383, %v552
        %p556 = scmp.lt.s32.totalorder %s21, 1
        %s557 = scalar_select %p556, %s21, 1
        %s558 = smul.addr %s557, 2
        %s559 = smul.addr %s558, 4
        %s560 = scalar_lea.vmem %s6, %s559
        // Predicated region
        $region61: #{cfg_denoiser_forward.1} parent=43 // pred_check
          %p561 = pneg %p170
        $region62: #{cfg_denoiser_forward.1} parent=43 // pred_check_branch
          %563 = sbr.rel (%p561) target = $region64
        $region63: #{cfg_denoiser_forward.1} parent=43 // pred_region
          _
        $region64: #{cfg_denoiser_forward.1} parent=43 // pred_fallthru
          _
      $region44: #{cfg_denoiser_forward.1} parent=5 // pred_fallthru
        _
      %p564 = scmp.le.s32.totalorder 2, %s16
      // Predicated region
      $region65: #{cfg_denoiser_forward.1} parent=5 // pred_check
        %p565 = pneg %p564
      $region66: #{cfg_denoiser_forward.1} parent=5 // pred_check_branch
        %567 = sbr.rel (%p565) target = $region68
      $region67: #{cfg_denoiser_forward.1} parent=5 // pred_region
        %s568 = ssub.s32 %s16, 2
        // Predicated region
        $region69: #{cfg_denoiser_forward.1} parent=67 // pred_check
          %p569 = pneg %p176
        $region70: #{cfg_denoiser_forward.1} parent=67 // pred_check_branch
          %571 = sbr.rel (%p569) target = $region72
        $region71: #{cfg_denoiser_forward.1} parent=67 // pred_region
          %p572 = scmp.lt.s32.totalorder %s22, 1
          %s573 = scalar_select %p572, %s22, 1
          %s574 = smul.addr %s573, 2
          %s575 = smul.addr %s574, 4
          %s576 = scalar_lea.vmem %s6, %s575
        $region72: #{cfg_denoiser_forward.1} parent=67 // pred_fallthru
          _
      $region68: #{cfg_denoiser_forward.1} parent=5 // pred_fallthru
        _
    $region6: #{cfg_denoiser_forward.1} parent=1 // loop_footer
      %s20 = sadd.s32 1, %s16
    $region7: #{cfg_denoiser_forward.1} parent=1 // loop_footer_branch
      %15 = sbr.rel target = $region3
    $region8: #{cfg_denoiser_forward.1} parent=1 // loop_exit
      _
    %577 = vsyncpa [#allocation4], 1
    %s578 = scalar_lea.sflag [#allocation4], 1
    %579 = vsyncpa %s578, 1
    %580 = vsyncpa [#allocation6], 1
    %581 = vsyncpa [#allocation9], 1

</llo_original>
